<compile_context>
chip_gen: v6e
topology: v6e:2x2x1
jax: 0.10.0
libtpu: 0.0.40
codegen_flags: <defaults>
</compile_context>

<pallas_src>
import functools

import jax
import jax.numpy as jnp
from jax.experimental import pallas as pl
from jax.experimental.pallas import tpu as pltpu


def _round_up(x, m):
    return ((x + m - 1) // m) * m


def _fused_emb_trans_kernel(x1_ref, x2_ref, w_ref, wT_ref, b_row_ref, b_col_ref,
                            o1_ref, o2_ref):
    # out1 tile: (TM, d) = x1 @ w + b   (row-broadcast bias)
    o1_ref[...] = (
        jnp.dot(x1_ref[...], w_ref[...], preferred_element_type=jnp.float32)
        + b_row_ref[...]
    )
    # out2 tile: (d, TM) = w.T @ x2 + b (column-broadcast bias) -- native layout,
    # no data transpose anywhere; w.T of the tiny resident weight is built once
    # in the wrapper.
    o2_ref[...] = (
        jnp.dot(wT_ref[...], x2_ref[...], preferred_element_type=jnp.float32)
        + b_col_ref[...]
    )


@functools.partial(jax.jit, static_argnames=("n",))
def emb_trans_forward(nodevec1, nodevec2, n, w, b):
    """nodevec1: (n, d), nodevec2: (d, n), w: (d, d), b: (d,)."""
    d = w.shape[0]
    f32 = jnp.float32

    # ---- Node-axis tiling -------------------------------------------------
    # TM must be a multiple of 128 (it is the lane dim of x2/out2 blocks when
    # the grid > 1).  Aim for a grid of ~2 so both v7x TensorCores get work,
    # cap the tile at 2048 rows, and pad N up to a multiple of TM.
    N128 = _round_up(n, 128)
    TM = min(2048, max(128, _round_up(-(-N128 // 2), 128)))
    N_pad = _round_up(N128, TM)
    grid = (N_pad // TM,)

    x1 = nodevec1.astype(f32)                    # (n, d)
    x2 = nodevec2.astype(f32)                    # (d, n)
    if N_pad != n:
        x1 = jnp.pad(x1, ((0, N_pad - n), (0, 0)))   # (N_pad, d)
        x2 = jnp.pad(x2, ((0, 0), (0, N_pad - n)))   # (d, N_pad)

    w_f = w.astype(f32)                          # (d, d), resident in VMEM
    wT_f = w_f.T                                 # tiny, one-time transpose
    b_row = b.astype(f32).reshape(1, d)          # (1, d) for out1 broadcast
    b_col = b.astype(f32).reshape(d, 1)          # (d, 1) for out2 broadcast

    # Real (unpadded) work: two n x d x d matmuls; f32 bytes for true n, d.
    cost = pl.CostEstimate(
        flops=4 * n * d * d,
        transcendentals=0,
        bytes_accessed=4 * (4 * n * d + 2 * d * d + 2 * d),
    )

    out1_p, out2_p = pl.pallas_call(
        _fused_emb_trans_kernel,
        out_shape=(
            jax.ShapeDtypeStruct((N_pad, d), f32),
            jax.ShapeDtypeStruct((d, N_pad), f32),
        ),
        grid=grid,
        in_specs=[
            pl.BlockSpec((TM, d), lambda i: (i, 0)),   # x1 tile (node rows)
            pl.BlockSpec((d, TM), lambda i: (0, i)),   # x2 tile (node lanes)
            pl.BlockSpec((d, d), lambda i: (0, 0)),    # w   (resident)
            pl.BlockSpec((d, d), lambda i: (0, 0)),    # w.T (resident)
            pl.BlockSpec((1, d), lambda i: (0, 0)),    # bias, row layout
            pl.BlockSpec((d, 1), lambda i: (0, 0)),    # bias, column layout
        ],
        out_specs=(
            pl.BlockSpec((TM, d), lambda i: (i, 0)),
            pl.BlockSpec((d, TM), lambda i: (0, i)),
        ),
        compiler_params=pltpu.CompilerParams(
            dimension_semantics=("parallel",),         # shard node tiles across TCs
        ),
        cost_estimate=cost,
    )(x1, x2, w_f, wT_f, b_row, b_col)

    if N_pad != n:
        # Padded out1 rows contain bias values (not zeros): slice them away.
        return out1_p[:n, :], out2_p[:, :n]
    return out1_p, out2_p


def _reference(nodevec1, nodevec2, w, b):
    ref1 = nodevec1 @ w + b[None, :]
    ref2 = (nodevec2.T @ w + b[None, :]).T
    return ref1, ref2


if __name__ == "__main__":
    n_dim = 10   # module default
    key = jax.random.PRNGKey(0)
    k1, k2, k3, k4, k5, k6 = jax.random.split(key, 6)

    # --- Case 1: module-default params (w = eye, b = zeros), small n ---------
    n = 8
    w = jnp.eye(n_dim, dtype=jnp.float32)
    b = jnp.zeros((n_dim,), dtype=jnp.float32)
    nodevec1 = jax.random.normal(k1, (n, n_dim), dtype=jnp.float32)
    nodevec2 = jax.random.normal(k2, (n_dim, n), dtype=jnp.float32)

    out1, out2 = emb_trans_forward(nodevec1, nodevec2, n, w, b)
    out1, out2 = jax.block_until_ready(out1), jax.block_until_ready(out2)
    ref1, ref2 = _reference(nodevec1, nodevec2, w, b)
    assert out1.shape == (n, n_dim) and out2.shape == (n_dim, n)
    assert jnp.allclose(out1, ref1, atol=1e-5)
    assert jnp.allclose(out2, ref2, atol=1e-5)

    # --- Case 2: random params, larger n (exercises grid = 2 tiling) ---------
    n2 = 640
    w2 = jax.random.normal(k3, (n_dim, n_dim), dtype=jnp.float32)
    b2 = jax.random.normal(k4, (n_dim,), dtype=jnp.float32)
    nv1 = jax.random.normal(k5, (n2, n_dim), dtype=jnp.float32)
    nv2 = jax.random.normal(k6, (n_dim, n2), dtype=jnp.float32)

    o1, o2 = emb_trans_forward(nv1, nv2, n2, w2, b2)
    o1, o2 = jax.block_until_ready(o1), jax.block_until_ready(o2)
    r1, r2 = _reference(nv1, nv2, w2, b2)
    assert o1.shape == (n2, n_dim) and o2.shape == (n_dim, n2)
    assert jnp.allclose(o1, r1, atol=1e-4)
    assert jnp.allclose(o2, r2, atol=1e-4)

    print("KERNEL_OK")
</pallas_src>

<mosaic_0001>
module attributes {stable_mosaic.version = 11 : i64} {
  func.func @_fused_emb_trans_kernel(%arg0: i32, %arg1: memref<128x10xf32, #tpu.memory_space<vmem>>, %arg2: memref<10x128xf32, #tpu.memory_space<vmem>>, %arg3: memref<10x10xf32, #tpu.memory_space<vmem>>, %arg4: memref<10x10xf32, #tpu.memory_space<vmem>>, %arg5: memref<1x10xf32, #tpu.memory_space<vmem>>, %arg6: memref<10x1xf32, #tpu.memory_space<vmem>>, %arg7: memref<128x10xf32, #tpu.memory_space<vmem>>, %arg8: memref<10x128xf32, #tpu.memory_space<vmem>>) attributes {dimension_semantics = [#tpu.dimension_semantics<parallel>], iteration_bounds = array<i64: 1>, scalar_prefetch = 0 : i64, scratch_operands = 0 : i64, tpu.core_type = #tpu.core_type<tc>, window_params = [{transform_indices = @transform_0, window_bounds = array<i64: 128, 10>}, {transform_indices = @transform_1, window_bounds = array<i64: 10, 128>}, {pipeline_mode = #tpu.pipeline_mode<synchronous>, transform_indices = @transform_2, window_bounds = array<i64: 10, 10>}, {pipeline_mode = #tpu.pipeline_mode<synchronous>, transform_indices = @transform_3, window_bounds = array<i64: 10, 10>}, {pipeline_mode = #tpu.pipeline_mode<synchronous>, transform_indices = @transform_4, window_bounds = array<i64: 1, 10>}, {pipeline_mode = #tpu.pipeline_mode<synchronous>, transform_indices = @transform_5, window_bounds = array<i64: 10, 1>}, {transform_indices = @transform_6, window_bounds = array<i64: 128, 10>}, {transform_indices = @transform_7, window_bounds = array<i64: 10, 128>}]} {
    %c0 = arith.constant 0 : index
    %c0_0 = arith.constant 0 : index
    %0 = vector.load %arg1[%c0, %c0_0] : memref<128x10xf32, #tpu.memory_space<vmem>>, vector<128x10xf32>
    %c0_1 = arith.constant 0 : index
    %c0_2 = arith.constant 0 : index
    %1 = vector.load %arg3[%c0_1, %c0_2] : memref<10x10xf32, #tpu.memory_space<vmem>>, vector<10x10xf32>
    %cst = arith.constant dense<0.000000e+00> : vector<128x10xf32>
    %2 = tpu.matmul %0, %1, %cst {dimension_numbers = #tpu.dot_dimension_numbers<[1], [0], [0], [1], [0, 0, 1, 1], [], []>} : vector<128x10xf32>, vector<10x10xf32>, vector<128x10xf32> -> vector<128x10xf32>
    %c0_3 = arith.constant 0 : index
    %c0_4 = arith.constant 0 : index
    %3 = vector.load %arg5[%c0_3, %c0_4] : memref<1x10xf32, #tpu.memory_space<vmem>>, vector<1x10xf32>
    %4 = vector.broadcast %3 : vector<1x10xf32> to vector<128x10xf32>
    %5 = arith.addf %2, %4 : vector<128x10xf32>
    %c0_5 = arith.constant 0 : index
    %c0_6 = arith.constant 0 : index
    %6 = vector.load %arg7[%c0_5, %c0_6] : memref<128x10xf32, #tpu.memory_space<vmem>>, vector<128x10xf32>
    tpu.vector_store %arg7[%c0_5, %c0_6], %5 {strides = array<i32>} : memref<128x10xf32, #tpu.memory_space<vmem>>, vector<128x10xf32>,
    %c0_7 = arith.constant 0 : index
    %c0_8 = arith.constant 0 : index
    %7 = vector.load %arg4[%c0_7, %c0_8] : memref<10x10xf32, #tpu.memory_space<vmem>>, vector<10x10xf32>
    %c0_9 = arith.constant 0 : index
    %c0_10 = arith.constant 0 : index
    %8 = vector.load %arg2[%c0_9, %c0_10] : memref<10x128xf32, #tpu.memory_space<vmem>>, vector<10x128xf32>
    %cst_11 = arith.constant dense<0.000000e+00> : vector<10x128xf32>
    %9 = tpu.matmul %7, %8, %cst_11 {dimension_numbers = #tpu.dot_dimension_numbers<[1], [0], [0], [1], [0, 0, 1, 1], [], []>} : vector<10x10xf32>, vector<10x128xf32>, vector<10x128xf32> -> vector<10x128xf32>
    %c0_12 = arith.constant 0 : index
    %c0_13 = arith.constant 0 : index
    %10 = vector.load %arg6[%c0_12, %c0_13] : memref<10x1xf32, #tpu.memory_space<vmem>>, vector<10x1xf32>
    %11 = vector.broadcast %10 : vector<10x1xf32> to vector<10x128xf32>
    %12 = arith.addf %9, %11 : vector<10x128xf32>
    %c0_14 = arith.constant 0 : index
    %c0_15 = arith.constant 0 : index
    %13 = vector.load %arg8[%c0_14, %c0_15] : memref<10x128xf32, #tpu.memory_space<vmem>>, vector<10x128xf32>
    tpu.vector_store %arg8[%c0_14, %c0_15], %12 {strides = array<i32>} : memref<10x128xf32, #tpu.memory_space<vmem>>, vector<10x128xf32>,
    return
  }
  func.func @transform_0(%arg0: i32) -> (i32, i32) {
    %c0_i32 = arith.constant 0 : i32
    %c0_i32_0 = arith.constant 0 : i32
    return %arg0, %c0_i32 : i32, i32
  }
  func.func @transform_1(%arg0: i32) -> (i32, i32) {
    %c0_i32 = arith.constant 0 : i32
    %c0_i32_0 = arith.constant 0 : i32
    return %c0_i32, %arg0 : i32, i32
  }
  func.func @transform_2(%arg0: i32) -> (i32, i32) {
    %c0_i32 = arith.constant 0 : i32
    %c0_i32_0 = arith.constant 0 : i32
    %c0_i32_1 = arith.constant 0 : i32
    return %c0_i32, %c0_i32_0 : i32, i32
  }
  func.func @transform_3(%arg0: i32) -> (i32, i32) {
    %c0_i32 = arith.constant 0 : i32
    %c0_i32_0 = arith.constant 0 : i32
    %c0_i32_1 = arith.constant 0 : i32
    return %c0_i32, %c0_i32_0 : i32, i32
  }
  func.func @transform_4(%arg0: i32) -> (i32, i32) {
    %c0_i32 = arith.constant 0 : i32
    %c0_i32_0 = arith.constant 0 : i32
    %c0_i32_1 = arith.constant 0 : i32
    return %c0_i32, %c0_i32_0 : i32, i32
  }
  func.func @transform_5(%arg0: i32) -> (i32, i32) {
    %c0_i32 = arith.constant 0 : i32
    %c0_i32_0 = arith.constant 0 : i32
    %c0_i32_1 = arith.constant 0 : i32
    return %c0_i32, %c0_i32_0 : i32, i32
  }
  func.func @transform_6(%arg0: i32) -> (i32, i32) {
    %c0_i32 = arith.constant 0 : i32
    %c0_i32_0 = arith.constant 0 : i32
    return %arg0, %c0_i32 : i32, i32
  }
  func.func @transform_7(%arg0: i32) -> (i32, i32) {
    %c0_i32 = arith.constant 0 : i32
    %c0_i32_0 = arith.constant 0 : i32
    return %c0_i32, %arg0 : i32, i32
  }
}

</mosaic_0001>

<llo_original>
// kernel: emb_trans_forward.1
$region0: #{emb_trans_forward.1}
  #allocation0 [shape = 'u32[]', space=smem, size = 0x4, offset = 0x4, fixed_abs, tag = 'smem constant byte address 0x4 - core index']
  #allocation1 [shape = 'u32[144,128]{1,0:T(1,128)}', space=vmem, size = 0x12000, scoped, tag = 'internal scratch']
  %s0 = inlined_call_operand.vmem [shape: f32[128,10], index: 0, kind: input, shape index: {}]
  %s1 = inlined_call_operand.vmem [shape: f32[10,128], index: 1, kind: input, shape index: {}]
  %s2 = inlined_call_operand.vmem [shape: f32[10,10], index: 2, kind: input, shape index: {}]
  %s3 = inlined_call_operand.vmem [shape: f32[10,10], index: 3, kind: input, shape index: {}]
  %s4 = inlined_call_operand.vmem [shape: f32[1,10], index: 4, kind: input, shape index: {}]
  %s5 = inlined_call_operand.vmem [shape: f32[10,1], index: 5, kind: input, shape index: {}]
  %s6 = inlined_call_operand.vmem [shape: f32[128,10], index: 6, kind: output, shape index: {0}]
  %s7 = inlined_call_operand.vmem [shape: f32[10,128], index: 7, kind: output, shape index: {1}]
  %8 = xla_tuple %s6, %s7
  %s9 = sld [smem:[#allocation0]]
  $region42: #{emb_trans_forward.1} parent=0
    _
  %s11 = ssub.s32 1, %s9
  %s12 = scalar_select 0, %s11, %s9
  // Predicated region
  $region2: #{emb_trans_forward.1} parent=0 // pred_check
    _
  $region3: #{emb_trans_forward.1} parent=0 // pred_check_branch
    %14 = sbr.rel (0) target = $region5
  $region4: #{emb_trans_forward.1} parent=0 // pred_region
    _
  $region5: #{emb_trans_forward.1} parent=0 // pred_fallthru
    _
  // Predicated region
  $region6: #{emb_trans_forward.1} parent=0 // pred_check
    _
  $region7: #{emb_trans_forward.1} parent=0 // pred_check_branch
    %16 = sbr.rel (0) target = $region9
  $region8: #{emb_trans_forward.1} parent=0 // pred_region
    _
  $region9: #{emb_trans_forward.1} parent=0 // pred_fallthru
    _
  // Predicated region
  $region10: #{emb_trans_forward.1} parent=0 // pred_check
    _
  $region11: #{emb_trans_forward.1} parent=0 // pred_check_branch
    %18 = sbr.rel (0) target = $region13
  $region12: #{emb_trans_forward.1} parent=0 // pred_region
    _
  $region13: #{emb_trans_forward.1} parent=0 // pred_fallthru
    _
  // Predicated region
  $region14: #{emb_trans_forward.1} parent=0 // pred_check
    _
  $region15: #{emb_trans_forward.1} parent=0 // pred_check_branch
    %20 = sbr.rel (0) target = $region17
  $region16: #{emb_trans_forward.1} parent=0 // pred_region
    _
  $region17: #{emb_trans_forward.1} parent=0 // pred_fallthru
    _
  // Predicated region
  $region18: #{emb_trans_forward.1} parent=0 // pred_check
    _
  $region19: #{emb_trans_forward.1} parent=0 // pred_check_branch
    %22 = sbr.rel (0) target = $region21
  $region20: #{emb_trans_forward.1} parent=0 // pred_region
    _
  $region21: #{emb_trans_forward.1} parent=0 // pred_fallthru
    _
  // Predicated region
  $region22: #{emb_trans_forward.1} parent=0 // pred_check
    _
  $region23: #{emb_trans_forward.1} parent=0 // pred_check_branch
    %24 = sbr.rel (0) target = $region25
  $region24: #{emb_trans_forward.1} parent=0 // pred_region
    _
  $region25: #{emb_trans_forward.1} parent=0 // pred_fallthru
    _
  %v25 = vld [vmem:[%s0] sm:$0xff]
  %v26 = vld [vmem:[%s0 + $0x8] sm:$0xff]
  %v27 = vld [vmem:[%s0 + $0x10] sm:$0xff]
  %v28 = vld [vmem:[%s0 + $0x18] sm:$0xff]
  %v29 = vld [vmem:[%s0 + $0x20] sm:$0xff]
  %v30 = vld [vmem:[%s0 + $0x28] sm:$0xff]
  %v31 = vld [vmem:[%s0 + $0x30] sm:$0xff]
  %v32 = vld [vmem:[%s0 + $0x38] sm:$0xff]
  %v33 = vld [vmem:[%s0 + $0x40] sm:$0xff]
  %v34 = vld [vmem:[%s0 + $0x48] sm:$0xff]
  %v35 = vld [vmem:[%s0 + $0x50] sm:$0xff]
  %v36 = vld [vmem:[%s0 + $0x58] sm:$0xff]
  %v37 = vld [vmem:[%s0 + $0x60] sm:$0xff]
  %v38 = vld [vmem:[%s0 + $0x68] sm:$0xff]
  %v39 = vld [vmem:[%s0 + $0x70] sm:$0xff]
  %v40 = vld [vmem:[%s0 + $0x78] sm:$0xff]
  %v41 = vld [vmem:[%s2] sm:$0xff]
  %v42 = vld [vmem:[%s2 + $0x8] sm:$0x3]
  %v43 = vld [vmem:[%s4] sm:$0x1]
  %v45 = vlaneseq
  %v46 = vshrl.u32 %v45, 7
  %v47 = vsub.s32 0, %v46
  %v48 = vrot.slane %v43, %v47
  %vm50 = vcmask 80896
  %v52 = vsel %vm50, %v25, 0
  %v55 = vsel %vm50, %v26, 0
  %v58 = vsel %vm50, %v27, 0
  %v61 = vsel %vm50, %v28, 0
  %v64 = vsel %vm50, %v29, 0
  %v67 = vsel %vm50, %v30, 0
  %v70 = vsel %vm50, %v31, 0
  %v73 = vsel %vm50, %v32, 0
  %v76 = vsel %vm50, %v33, 0
  %v79 = vsel %vm50, %v34, 0
  %v82 = vsel %vm50, %v35, 0
  %v85 = vsel %vm50, %v36, 0
  %v88 = vsel %vm50, %v37, 0
  %v91 = vsel %vm50, %v38, 0
  %v94 = vsel %vm50, %v39, 0
  %v97 = vsel %vm50, %v40, 0
  %vm99 = vcmask 1041408
  %v101 = vsel %vm99, %v42, 0
  %103 = vmatprep.subr.mxu0 0.0
  %104 = vmatpush1.msra.mxu0 0.0
  %105 = vmatprep.subr.mxu0 0.0
  %106 = vmatpush1.msra.mxu0 0.0
  %107 = vmatprep.subr.mxu0 0.0
  %108 = vmatpush1.msra.mxu0 0.0
  %109 = vmatprep.subr.mxu0 0.0
  %110 = vmatpush1.msra.mxu0 0.0
  %111 = vmatprep.subr.mxu0 0.0
  %112 = vmatpush1.msra.mxu0 0.0
  %113 = vmatprep.subr.mxu0 0.0
  %114 = vmatpush1.msra.mxu0 0.0
  %115 = vmatprep.subr.mxu0 0.0
  %116 = vmatpush1.msra.mxu0 0.0
  %117 = vmatprep.subr.mxu0 0.0
  %118 = vmatpush1.msra.mxu0 0.0
  %119 = vmatprep.subr.mxu0 0.0
  %120 = vmatpush1.msra.mxu0 0.0
  %121 = vmatprep.subr.mxu0 0.0
  %122 = vmatpush1.msra.mxu0 0.0
  %123 = vmatprep.subr.mxu0 0.0
  %124 = vmatpush1.msra.mxu0 0.0
  %125 = vmatprep.subr.mxu0 0.0
  %126 = vmatpush1.msra.mxu0 0.0
  %127 = vmatprep.subr.mxu0 0.0
  %128 = vmatpush1.msra.mxu0 0.0
  %129 = vmatprep.subr.mxu0 0.0
  %130 = vmatpush1.msra.mxu0 0.0
  %131 = vmatprep.subr.mxu0 0.0
  %132 = vmatpush1.msra.mxu0 %v101
  %133 = vmatprep.subr.mxu0 0.0
  %134 = vmatpush1.msra.mxu0 %v41
  %135 = vmatprep.subr.mxu0 0.0
  %136 = vmatpush2.msra.mxu0 0.0
  %137 = vmatprep.subr.mxu0 0.0
  %138 = vmatpush2.msra.mxu0 0.0
  %139 = vmatprep.subr.mxu0 0.0
  %140 = vmatpush2.msra.mxu0 0.0
  %141 = vmatprep.subr.mxu0 0.0
  %142 = vmatpush2.msra.mxu0 0.0
  %143 = vmatprep.subr.mxu0 0.0
  %144 = vmatpush2.msra.mxu0 0.0
  %145 = vmatprep.subr.mxu0 0.0
  %146 = vmatpush2.msra.mxu0 0.0
  %147 = vmatprep.subr.mxu0 0.0
  %148 = vmatpush2.msra.mxu0 0.0
  %149 = vmatprep.subr.mxu0 0.0
  %150 = vmatpush2.msra.mxu0 0.0
  %151 = vmatprep.subr.mxu0 0.0
  %152 = vmatpush2.msra.mxu0 0.0
  %153 = vmatprep.subr.mxu0 0.0
  %154 = vmatpush2.msra.mxu0 0.0
  %155 = vmatprep.subr.mxu0 0.0
  %156 = vmatpush2.msra.mxu0 0.0
  %157 = vmatprep.subr.mxu0 0.0
  %158 = vmatpush2.msra.mxu0 0.0
  %159 = vmatprep.subr.mxu0 0.0
  %160 = vmatpush2.msra.mxu0 0.0
  %161 = vmatprep.subr.mxu0 0.0
  %162 = vmatpush2.msra.mxu0 0.0
  %163 = vmatprep.subr.mxu0 0.0
  %164 = vmatpush2.msra.mxu0 0.0
  %165 = vmatprep.subr.mxu0 0.0
  %166 = vmatpush2.msra.mxu0 0.0
  %167 = vmatprep.mubr.f32.mxu0 0.0
  %168 = vmatmul.mubr.f32.gmra.mxu0 %v52
  %v169 = vpop.f32.mrf.mxu0
  %v170 = vadd.f32 %v48, %v169
  %v171 = vpop.f32.mrf.mxu0
  %172 = vmatprep.mubr.f32.mxu0 0.0
  %173 = vmatmul.mubr.f32.gmra.mxu0 %v55
  %v174 = vpop.f32.mrf.mxu0
  %v175 = vadd.f32 %v48, %v174
  %v176 = vpop.f32.mrf.mxu0
  %177 = vmatprep.mubr.f32.mxu0 0.0
  %178 = vmatmul.mubr.f32.gmra.mxu0 %v58
  %v179 = vpop.f32.mrf.mxu0
  %v180 = vadd.f32 %v48, %v179
  %v181 = vpop.f32.mrf.mxu0
  %182 = vmatprep.mubr.f32.mxu0 0.0
  %183 = vmatmul.mubr.f32.gmra.mxu0 %v61
  %v184 = vpop.f32.mrf.mxu0
  %v185 = vadd.f32 %v48, %v184
  %v186 = vpop.f32.mrf.mxu0
  %187 = vmatprep.mubr.f32.mxu0 0.0
  %188 = vmatmul.mubr.f32.gmra.mxu0 %v64
  %v189 = vpop.f32.mrf.mxu0
  %v190 = vadd.f32 %v48, %v189
  %v191 = vpop.f32.mrf.mxu0
  %192 = vmatprep.mubr.f32.mxu0 0.0
  %193 = vmatmul.mubr.f32.gmra.mxu0 %v67
  %v194 = vpop.f32.mrf.mxu0
  %v195 = vadd.f32 %v48, %v194
  %v196 = vpop.f32.mrf.mxu0
  %197 = vmatprep.mubr.f32.mxu0 0.0
  %198 = vmatmul.mubr.f32.gmra.mxu0 %v70
  %v199 = vpop.f32.mrf.mxu0
  %v200 = vadd.f32 %v48, %v199
  %v201 = vpop.f32.mrf.mxu0
  %202 = vmatprep.mubr.f32.mxu0 0.0
  %203 = vmatmul.mubr.f32.gmra.mxu0 %v73
  %v204 = vpop.f32.mrf.mxu0
  %v205 = vadd.f32 %v48, %v204
  %v206 = vpop.f32.mrf.mxu0
  %207 = vmatprep.mubr.f32.mxu0 0.0
  %208 = vmatmul.mubr.f32.gmra.mxu0 %v76
  %v209 = vpop.f32.mrf.mxu0
  %v210 = vadd.f32 %v48, %v209
  %v211 = vpop.f32.mrf.mxu0
  %212 = vmatprep.mubr.f32.mxu0 0.0
  %213 = vmatmul.mubr.f32.gmra.mxu0 %v79
  %v214 = vpop.f32.mrf.mxu0
  %v215 = vadd.f32 %v48, %v214
  %v216 = vpop.f32.mrf.mxu0
  %217 = vmatprep.mubr.f32.mxu0 0.0
  %218 = vmatmul.mubr.f32.gmra.mxu0 %v82
  %v219 = vpop.f32.mrf.mxu0
  %v220 = vadd.f32 %v48, %v219
  %v221 = vpop.f32.mrf.mxu0
  %222 = vmatprep.mubr.f32.mxu0 0.0
  %223 = vmatmul.mubr.f32.gmra.mxu0 %v85
  %v224 = vpop.f32.mrf.mxu0
  %v225 = vadd.f32 %v48, %v224
  %v226 = vpop.f32.mrf.mxu0
  %227 = vmatprep.mubr.f32.mxu0 0.0
  %228 = vmatmul.mubr.f32.gmra.mxu0 %v88
  %v229 = vpop.f32.mrf.mxu0
  %v230 = vadd.f32 %v48, %v229
  %v231 = vpop.f32.mrf.mxu0
  %232 = vmatprep.mubr.f32.mxu0 0.0
  %233 = vmatmul.mubr.f32.gmra.mxu0 %v91
  %v234 = vpop.f32.mrf.mxu0
  %v235 = vadd.f32 %v48, %v234
  %v236 = vpop.f32.mrf.mxu0
  %237 = vmatprep.mubr.f32.mxu0 0.0
  %238 = vmatmul.mubr.f32.gmra.mxu0 %v94
  %v239 = vpop.f32.mrf.mxu0
  %v240 = vadd.f32 %v48, %v239
  %v241 = vpop.f32.mrf.mxu0
  %242 = vmatprep.mubr.f32.mxu0 0.0
  %243 = vmatmul.mubr.f32.gmra.mxu0 %v97
  %v244 = vpop.f32.mrf.mxu0
  %v245 = vadd.f32 %v48, %v244
  %v246 = vpop.f32.mrf.mxu0
  %247 = vdwg.mxu0
  %248 = vst.msk [vmem:[%s6] sm:$0xff] %vm50, %v170
  %249 = vst.msk [vmem:[%s6 + $0x8] sm:$0xff] %vm50, %v175
  %250 = vst.msk [vmem:[%s6 + $0x10] sm:$0xff] %vm50, %v180
  %251 = vst.msk [vmem:[%s6 + $0x18] sm:$0xff] %vm50, %v185
  %252 = vst.msk [vmem:[%s6 + $0x20] sm:$0xff] %vm50, %v190
  %253 = vst.msk [vmem:[%s6 + $0x28] sm:$0xff] %vm50, %v195
  %254 = vst.msk [vmem:[%s6 + $0x30] sm:$0xff] %vm50, %v200
  %255 = vst.msk [vmem:[%s6 + $0x38] sm:$0xff] %vm50, %v205
  %256 = vst.msk [vmem:[%s6 + $0x40] sm:$0xff] %vm50, %v210
  %257 = vst.msk [vmem:[%s6 + $0x48] sm:$0xff] %vm50, %v215
  %258 = vst.msk [vmem:[%s6 + $0x50] sm:$0xff] %vm50, %v220
  %259 = vst.msk [vmem:[%s6 + $0x58] sm:$0xff] %vm50, %v225
  %260 = vst.msk [vmem:[%s6 + $0x60] sm:$0xff] %vm50, %v230
  %261 = vst.msk [vmem:[%s6 + $0x68] sm:$0xff] %vm50, %v235
  %262 = vst.msk [vmem:[%s6 + $0x70] sm:$0xff] %vm50, %v240
  %263 = vst.msk [vmem:[%s6 + $0x78] sm:$0xff] %vm50, %v245
  %v264 = vld [vmem:[%s3] sm:$0xff]
  %v265 = vld [vmem:[%s3 + $0x8] sm:$0x3]
  %v266 = vld [vmem:[%s1] sm:$0xff]
  %v267 = vld [vmem:[%s1 + $0x8] sm:$0x3]
  %v268 = vld [vmem:[%s5] sm:$0xff]
  %v269 = vld [vmem:[%s5 + $0x8] sm:$0x3]
  %271 = vset.pattern.permute.xlu0 0
  %272 = vperm.xlu0 %271, %v268
  %v273 = vpop.permute.xlu0 %272
  %276 = vset.pattern.permute.xlu0 0
  %277 = vperm.xlu0 %276, %v269
  %v278 = vpop.permute.xlu0 %277
  %v281 = vsel %vm50, %v264, 0
  %v284 = vsel %vm50, %v265, 0
  %v287 = vsel %vm99, %v267, 0
  %289 = vmatprep.subr.mxu0 0.0
  %290 = vmatpush1.msra.mxu0 0.0
  %291 = vmatprep.subr.mxu0 0.0
  %292 = vmatpush1.msra.mxu0 0.0
  %293 = vmatprep.subr.mxu0 0.0
  %294 = vmatpush1.msra.mxu0 0.0
  %295 = vmatprep.subr.mxu0 0.0
  %296 = vmatpush1.msra.mxu0 0.0
  %297 = vmatprep.subr.mxu0 0.0
  %298 = vmatpush1.msra.mxu0 0.0
  %299 = vmatprep.subr.mxu0 0.0
  %300 = vmatpush1.msra.mxu0 0.0
  %301 = vmatprep.subr.mxu0 0.0
  %302 = vmatpush1.msra.mxu0 0.0
  %303 = vmatprep.subr.mxu0 0.0
  %304 = vmatpush1.msra.mxu0 0.0
  %305 = vmatprep.subr.mxu0 0.0
  %306 = vmatpush1.msra.mxu0 0.0
  %307 = vmatprep.subr.mxu0 0.0
  %308 = vmatpush1.msra.mxu0 0.0
  %309 = vmatprep.subr.mxu0 0.0
  %310 = vmatpush1.msra.mxu0 0.0
  %311 = vmatprep.subr.mxu0 0.0
  %312 = vmatpush1.msra.mxu0 0.0
  %313 = vmatprep.subr.mxu0 0.0
  %314 = vmatpush1.msra.mxu0 0.0
  %315 = vmatprep.subr.mxu0 0.0
  %316 = vmatpush1.msra.mxu0 0.0
  %317 = vmatprep.subr.mxu0 0.0
  %318 = vmatpush1.msra.mxu0 %v287
  %319 = vmatprep.subr.mxu0 0.0
  %320 = vmatpush1.msra.mxu0 %v266
  %321 = vmatprep.subr.mxu0 0.0
  %322 = vmatpush2.msra.mxu0 0.0
  %323 = vmatprep.subr.mxu0 0.0
  %324 = vmatpush2.msra.mxu0 0.0
  %325 = vmatprep.subr.mxu0 0.0
  %326 = vmatpush2.msra.mxu0 0.0
  %327 = vmatprep.subr.mxu0 0.0
  %328 = vmatpush2.msra.mxu0 0.0
  %329 = vmatprep.subr.mxu0 0.0
  %330 = vmatpush2.msra.mxu0 0.0
  %331 = vmatprep.subr.mxu0 0.0
  %332 = vmatpush2.msra.mxu0 0.0
  %333 = vmatprep.subr.mxu0 0.0
  %334 = vmatpush2.msra.mxu0 0.0
  %335 = vmatprep.subr.mxu0 0.0
  %336 = vmatpush2.msra.mxu0 0.0
  %337 = vmatprep.subr.mxu0 0.0
  %338 = vmatpush2.msra.mxu0 0.0
  %339 = vmatprep.subr.mxu0 0.0
  %340 = vmatpush2.msra.mxu0 0.0
  %341 = vmatprep.subr.mxu0 0.0
  %342 = vmatpush2.msra.mxu0 0.0
  %343 = vmatprep.subr.mxu0 0.0
  %344 = vmatpush2.msra.mxu0 0.0
  %345 = vmatprep.subr.mxu0 0.0
  %346 = vmatpush2.msra.mxu0 0.0
  %347 = vmatprep.subr.mxu0 0.0
  %348 = vmatpush2.msra.mxu0 0.0
  %349 = vmatprep.subr.mxu0 0.0
  %350 = vmatpush2.msra.mxu0 0.0
  %351 = vmatprep.subr.mxu0 0.0
  %352 = vmatpush2.msra.mxu0 0.0
  %353 = vmatprep.mubr.f32.mxu0 0.0
  %354 = vmatmul.mubr.f32.gmra.mxu0 %v281
  %v355 = vpop.f32.mrf.mxu0
  %v356 = vadd.f32 %v273, %v355
  %v357 = vpop.f32.mrf.mxu0
  %358 = vmatprep.mubr.f32.mxu0 0.0
  %359 = vmatmul.mubr.f32.gmra.mxu0 %v284
  %v360 = vpop.f32.mrf.mxu0
  %v361 = vadd.f32 %v278, %v360
  %v362 = vpop.f32.mrf.mxu0
  %363 = vdwg.mxu0
  %364 = vst [vmem:[%s7] sm:$0xff] %v356
  %365 = vst [vmem:[%s7 + $0x8] sm:$0x3] %v361
  // Predicated region
  $region26: #{emb_trans_forward.1} parent=0 // pred_check
    _
  $region27: #{emb_trans_forward.1} parent=0 // pred_check_branch
    %367 = sbr.rel (0) target = $region29
  $region28: #{emb_trans_forward.1} parent=0 // pred_region
    _
  $region29: #{emb_trans_forward.1} parent=0 // pred_fallthru
    _
  // Predicated region
  $region30: #{emb_trans_forward.1} parent=0 // pred_check
    _
  $region31: #{emb_trans_forward.1} parent=0 // pred_check_branch
    %369 = sbr.rel (0) target = $region33
  $region32: #{emb_trans_forward.1} parent=0 // pred_region
    _
  $region33: #{emb_trans_forward.1} parent=0 // pred_fallthru
    _
  // Predicated region
  $region34: #{emb_trans_forward.1} parent=0 // pred_check
    _
  $region35: #{emb_trans_forward.1} parent=0 // pred_check_branch
    %371 = sbr.rel (0) target = $region37
  $region36: #{emb_trans_forward.1} parent=0 // pred_region
    _
  $region37: #{emb_trans_forward.1} parent=0 // pred_fallthru
    _
  // Predicated region
  $region38: #{emb_trans_forward.1} parent=0 // pred_check
    _
  $region39: #{emb_trans_forward.1} parent=0 // pred_check_branch
    %373 = sbr.rel (0) target = $region41
  $region40: #{emb_trans_forward.1} parent=0 // pred_region
    _
  $region41: #{emb_trans_forward.1} parent=0 // pred_fallthru
    _

</llo_original>
